<compile_context>
chip_gen: v5e
topology: v5e:2x2
jax: 0.10.0
libtpu: 0.0.40
codegen_flags: <defaults>
</compile_context>

<pallas_src>
import functools

import jax
import jax.numpy as jnp
from jax.experimental import pallas as pl
from jax.experimental.pallas import tpu as pltpu

LANE = 128          # lane width (last-dim granularity)
BF16_SUBLANE = 16   # a bf16 vreg holds 16 sublane rows -> round batch tiles to 16
B_TILE_MAX = 1024   # big tiles amortize the ~0.35 us/grid-step overhead


def _round_up(x, m):
    return (x + m - 1) // m * m


def qnet_kernel(x_ref, w1_ref, b1_ref, w2_ref, b2_ref, o_ref):
    # x_ref : (B_TILE, IN)    f32   (native width, cast to bf16 here)
    # w1_ref: (IN, HID_P)     bf16  b1_ref: (1, HID_P)  f32
    # w2_ref: (HID_P, OUT)    bf16  b2_ref: (1, OUT)    f32
    # o_ref : (B_TILE, OUT)   f32
    x = x_ref[...].astype(jnp.bfloat16)
    h = jnp.dot(x, w1_ref[...], preferred_element_type=jnp.float32) + b1_ref[...]
    h = jnp.maximum(h, 0.0)                 # ReLU in f32 (v5e-friendly epilogue)
    h = h.astype(jnp.bfloat16)              # bf16 operand for the 2nd MXU pass
    o = jnp.dot(h, w2_ref[...], preferred_element_type=jnp.float32) + b2_ref[...]
    o_ref[...] = o.astype(o_ref.dtype)


def prepare_params(w1, b1, w2, b2):
    """One-time parameter prep (call at init, NOT per forward).

    Accepts w1:(in,hidden), b1:(hidden,) or (1,hidden), w2:(hidden,out),
    b2:(out,) or (1,out).  Weights are stored transposed vs. PyTorch
    (in_features, out_features) so x @ W + b == nn.Linear(x).
    Casts weights to bf16 and zero-pads only the hidden dim to a lane multiple;
    padded hidden lanes contribute exactly 0 through ReLU + the second matmul.
    """
    in_dim, hid = w1.shape
    out_dim = w2.shape[-1]
    hid_p = _round_up(hid, LANE)

    w1_p = jnp.zeros((in_dim, hid_p), jnp.bfloat16).at[:, :hid].set(
        w1.astype(jnp.bfloat16))
    b1_p = jnp.zeros((1, hid_p), jnp.float32).at[:, :hid].set(
        jnp.asarray(b1, jnp.float32).reshape(1, hid))
    w2_p = jnp.zeros((hid_p, out_dim), jnp.bfloat16).at[:hid, :].set(
        w2.astype(jnp.bfloat16))
    b2_p = jnp.asarray(b2, jnp.float32).reshape(1, out_dim)
    return w1_p, b1_p, w2_p, b2_p


def _choose_b_tile(batch):
    if batch <= BF16_SUBLANE:
        return BF16_SUBLANE
    # Aim for >= 2 grid steps so both TensorCores get work on v7x.
    half = _round_up(-(-batch // 2), BF16_SUBLANE)
    return min(B_TILE_MAX, half)


@jax.jit
def linear_qnet_forward(x, prepared):
    """Forward of Linear_Qnet: relu(x @ w1 + b1) @ w2 + b2.

    x: (B, in_dim) float32.  `prepared` is the tuple from prepare_params().
    """
    w1_p, b1_p, w2_p, b2_p = prepared
    batch, in_dim = x.shape
    hid_p = w1_p.shape[1]
    out_dim = w2_p.shape[1]

    b_tile = _choose_b_tile(batch)
    b_pad = _round_up(batch, b_tile)
    x_in = x if b_pad == batch else jnp.pad(x, ((0, b_pad - batch), (0, 0)))

    grid = (b_pad // b_tile,)
    out = pl.pallas_call(
        qnet_kernel,
        out_shape=jax.ShapeDtypeStruct((b_pad, out_dim), jnp.float32),
        grid=grid,
        in_specs=[
            # x streams over the batch grid axis at its native feature width.
            pl.BlockSpec((b_tile, in_dim), lambda i: (i, 0)),
            # Weights/biases: constant index_map -> resident in VMEM across steps.
            pl.BlockSpec((in_dim, hid_p), lambda i: (0, 0)),
            pl.BlockSpec((1, hid_p), lambda i: (0, 0)),
            pl.BlockSpec((hid_p, out_dim), lambda i: (0, 0)),
            pl.BlockSpec((1, out_dim), lambda i: (0, 0)),
        ],
        # Output at native (small) width: no 128-lane over-padding, no slice pass.
        out_specs=pl.BlockSpec((b_tile, out_dim), lambda i: (i, 0)),
        compiler_params=pltpu.CompilerParams(
            dimension_semantics=("parallel",),  # batch steps shard across TCs on v7x
        ),
    )(x_in, w1_p, b1_p, w2_p, b2_p)

    return out if b_pad == batch else out[:batch]


def init_params(key, input_size, hidden_size, output_size):
    # Deterministic init mimicking nn.Linear's uniform(-1/sqrt(fan_in), 1/sqrt(fan_in)).
    k1, k2, k3, k4 = jax.random.split(key, 4)
    lim1 = 1.0 / jnp.sqrt(jnp.float32(input_size))
    lim2 = 1.0 / jnp.sqrt(jnp.float32(hidden_size))
    w1 = jax.random.uniform(k1, (input_size, hidden_size), jnp.float32, -lim1, lim1)
    b1 = jax.random.uniform(k2, (hidden_size,), jnp.float32, -lim1, lim1)
    w2 = jax.random.uniform(k3, (hidden_size, output_size), jnp.float32, -lim2, lim2)
    b2 = jax.random.uniform(k4, (output_size,), jnp.float32, -lim2, lim2)
    return w1, b1, w2, b2


if __name__ == "__main__":
    key = jax.random.PRNGKey(0)
    batch, input_size, hidden_size, output_size = 8, 16, 32, 4

    kx, kp = jax.random.split(key)
    x = jax.random.normal(kx, (batch, input_size), jnp.float32)
    w1, b1, w2, b2 = init_params(kp, input_size, hidden_size, output_size)

    # One-time parameter prep (hoisted out of the per-call forward path).
    prepared = prepare_params(w1, b1, w2, b2)

    out = linear_qnet_forward(x, prepared)
    out = jax.block_until_ready(out)

    # Pure-JAX f32 reference of the forward semantics.
    ref = jnp.maximum(x @ w1 + b1[None, :], 0.0) @ w2 + b2[None, :]

    assert out.shape == (batch, output_size)
    # bf16 MXU operands with f32 accumulation -> loosen tolerance vs. f32 ref.
    assert jnp.allclose(out, ref, atol=2e-2, rtol=2e-2), (
        f"max abs err = {jnp.max(jnp.abs(out - ref))}")

    # TODO(synk): Linear_Qnet.save() (torch.save of state_dict) is file I/O, not a
    # forward-pass op; intentionally not implemented as a kernel.
    print("KERNEL_OK")
</pallas_src>

<mosaic_0001>
module attributes {stable_mosaic.version = 11 : i64} {
  func.func @qnet_kernel(%arg0: i32, %arg1: memref<16x16xf32, #tpu.memory_space<vmem>>, %arg2: memref<16x128xbf16, #tpu.memory_space<vmem>>, %arg3: memref<1x128xf32, #tpu.memory_space<vmem>>, %arg4: memref<128x4xbf16, #tpu.memory_space<vmem>>, %arg5: memref<1x4xf32, #tpu.memory_space<vmem>>, %arg6: memref<16x4xf32, #tpu.memory_space<vmem>>) attributes {dimension_semantics = [#tpu.dimension_semantics<parallel>], iteration_bounds = array<i64: 1>, scalar_prefetch = 0 : i64, scratch_operands = 0 : i64, tpu.core_type = #tpu.core_type<tc>, window_params = [{transform_indices = @transform_0, window_bounds = array<i64: 16, 16>}, {pipeline_mode = #tpu.pipeline_mode<synchronous>, transform_indices = @transform_1, window_bounds = array<i64: 16, 128>}, {pipeline_mode = #tpu.pipeline_mode<synchronous>, transform_indices = @transform_2, window_bounds = array<i64: 1, 128>}, {pipeline_mode = #tpu.pipeline_mode<synchronous>, transform_indices = @transform_3, window_bounds = array<i64: 128, 4>}, {pipeline_mode = #tpu.pipeline_mode<synchronous>, transform_indices = @transform_4, window_bounds = array<i64: 1, 4>}, {transform_indices = @transform_5, window_bounds = array<i64: 16, 4>}]} {
    %c0 = arith.constant 0 : index
    %c0_0 = arith.constant 0 : index
    %0 = vector.load %arg1[%c0, %c0_0] : memref<16x16xf32, #tpu.memory_space<vmem>>, vector<16x16xf32>
    %1 = arith.truncf %0 : vector<16x16xf32> to vector<16x16xbf16>
    %c0_1 = arith.constant 0 : index
    %c0_2 = arith.constant 0 : index
    %2 = vector.load %arg2[%c0_1, %c0_2] : memref<16x128xbf16, #tpu.memory_space<vmem>>, vector<16x128xbf16>
    %cst = arith.constant dense<0.000000e+00> : vector<16x128xf32>
    %3 = tpu.matmul %1, %2, %cst {dimension_numbers = #tpu.dot_dimension_numbers<[1], [0], [0], [1], [0, 0, 1, 1], [], []>} : vector<16x16xbf16>, vector<16x128xbf16>, vector<16x128xf32> -> vector<16x128xf32>
    %c0_3 = arith.constant 0 : index
    %c0_4 = arith.constant 0 : index
    %4 = vector.load %arg3[%c0_3, %c0_4] : memref<1x128xf32, #tpu.memory_space<vmem>>, vector<1x128xf32>
    %5 = vector.broadcast %4 : vector<1x128xf32> to vector<16x128xf32>
    %6 = arith.addf %3, %5 : vector<16x128xf32>
    %cst_5 = arith.constant 0.000000e+00 : f32
    %7 = vector.broadcast %cst_5 : f32 to vector<16x128xf32>
    %8 = arith.maximumf %6, %7 : vector<16x128xf32>
    %9 = arith.truncf %8 : vector<16x128xf32> to vector<16x128xbf16>
    %c0_6 = arith.constant 0 : index
    %c0_7 = arith.constant 0 : index
    %10 = vector.load %arg4[%c0_6, %c0_7] : memref<128x4xbf16, #tpu.memory_space<vmem>>, vector<128x4xbf16>
    %cst_8 = arith.constant dense<0.000000e+00> : vector<16x4xf32>
    %11 = tpu.matmul %9, %10, %cst_8 {dimension_numbers = #tpu.dot_dimension_numbers<[1], [0], [0], [1], [0, 0, 1, 1], [], []>} : vector<16x128xbf16>, vector<128x4xbf16>, vector<16x4xf32> -> vector<16x4xf32>
    %c0_9 = arith.constant 0 : index
    %c0_10 = arith.constant 0 : index
    %12 = vector.load %arg5[%c0_9, %c0_10] : memref<1x4xf32, #tpu.memory_space<vmem>>, vector<1x4xf32>
    %13 = vector.broadcast %12 : vector<1x4xf32> to vector<16x4xf32>
    %14 = arith.addf %11, %13 : vector<16x4xf32>
    %c0_11 = arith.constant 0 : index
    %c0_12 = arith.constant 0 : index
    %15 = vector.load %arg6[%c0_11, %c0_12] : memref<16x4xf32, #tpu.memory_space<vmem>>, vector<16x4xf32>
    tpu.vector_store %arg6[%c0_11, %c0_12], %14 {strides = array<i32>} : memref<16x4xf32, #tpu.memory_space<vmem>>, vector<16x4xf32>,
    return
  }
  func.func @transform_0(%arg0: i32) -> (i32, i32) {
    %c0_i32 = arith.constant 0 : i32
    %c0_i32_0 = arith.constant 0 : i32
    return %arg0, %c0_i32 : i32, i32
  }
  func.func @transform_1(%arg0: i32) -> (i32, i32) {
    %c0_i32 = arith.constant 0 : i32
    %c0_i32_0 = arith.constant 0 : i32
    %c0_i32_1 = arith.constant 0 : i32
    return %c0_i32, %c0_i32_0 : i32, i32
  }
  func.func @transform_2(%arg0: i32) -> (i32, i32) {
    %c0_i32 = arith.constant 0 : i32
    %c0_i32_0 = arith.constant 0 : i32
    %c0_i32_1 = arith.constant 0 : i32
    return %c0_i32, %c0_i32_0 : i32, i32
  }
  func.func @transform_3(%arg0: i32) -> (i32, i32) {
    %c0_i32 = arith.constant 0 : i32
    %c0_i32_0 = arith.constant 0 : i32
    %c0_i32_1 = arith.constant 0 : i32
    return %c0_i32, %c0_i32_0 : i32, i32
  }
  func.func @transform_4(%arg0: i32) -> (i32, i32) {
    %c0_i32 = arith.constant 0 : i32
    %c0_i32_0 = arith.constant 0 : i32
    %c0_i32_1 = arith.constant 0 : i32
    return %c0_i32, %c0_i32_0 : i32, i32
  }
  func.func @transform_5(%arg0: i32) -> (i32, i32) {
    %c0_i32 = arith.constant 0 : i32
    %c0_i32_0 = arith.constant 0 : i32
    return %arg0, %c0_i32 : i32, i32
  }
}

</mosaic_0001>

<llo_original>
// kernel: linear_qnet_forward.1
$region0: #{linear_qnet_forward.1}
  #allocation0 [shape = 'u32[]', space=smem, size = 0x4, offset = 0x4, fixed_abs, tag = 'smem constant byte address 0x4 - core index']
  #allocation1 [shape = 'u32[72,128]{1,0:T(1,128)}', space=vmem, size = 0x9000, scoped, tag = 'internal scratch']
  %s0 = inlined_call_operand.vmem [shape: f32[16,16], index: 0, kind: input, shape index: {}]
  %s1 = inlined_call_operand.vmem [shape: bf16[16,128], index: 1, kind: input, shape index: {}]
  %s2 = inlined_call_operand.vmem [shape: f32[1,128], index: 2, kind: input, shape index: {}]
  %s3 = inlined_call_operand.vmem [shape: bf16[128,4], index: 3, kind: input, shape index: {}]
  %s4 = inlined_call_operand.vmem [shape: f32[1,4], index: 4, kind: input, shape index: {}]
  %s5 = inlined_call_operand.vmem [shape: f32[16,4], index: 5, kind: output, shape index: {}]
  %s6 = sld [smem:[#allocation0]]
  $region30: #{linear_qnet_forward.1} parent=0
    _
  %s8 = ssub.s32 1, %s6
  %s9 = scalar_select 0, %s8, %s6
  // Predicated region
  $region2: #{linear_qnet_forward.1} parent=0 // pred_check
    _
  $region3: #{linear_qnet_forward.1} parent=0 // pred_check_branch
    %11 = sbr.rel (0) target = $region5
  $region4: #{linear_qnet_forward.1} parent=0 // pred_region
    _
  $region5: #{linear_qnet_forward.1} parent=0 // pred_fallthru
    _
  // Predicated region
  $region6: #{linear_qnet_forward.1} parent=0 // pred_check
    _
  $region7: #{linear_qnet_forward.1} parent=0 // pred_check_branch
    %13 = sbr.rel (0) target = $region9
  $region8: #{linear_qnet_forward.1} parent=0 // pred_region
    _
  $region9: #{linear_qnet_forward.1} parent=0 // pred_fallthru
    _
  // Predicated region
  $region10: #{linear_qnet_forward.1} parent=0 // pred_check
    _
  $region11: #{linear_qnet_forward.1} parent=0 // pred_check_branch
    %15 = sbr.rel (0) target = $region13
  $region12: #{linear_qnet_forward.1} parent=0 // pred_region
    _
  $region13: #{linear_qnet_forward.1} parent=0 // pred_fallthru
    _
  // Predicated region
  $region14: #{linear_qnet_forward.1} parent=0 // pred_check
    _
  $region15: #{linear_qnet_forward.1} parent=0 // pred_check_branch
    %17 = sbr.rel (0) target = $region17
  $region16: #{linear_qnet_forward.1} parent=0 // pred_region
    _
  $region17: #{linear_qnet_forward.1} parent=0 // pred_fallthru
    _
  // Predicated region
  $region18: #{linear_qnet_forward.1} parent=0 // pred_check
    _
  $region19: #{linear_qnet_forward.1} parent=0 // pred_check_branch
    %19 = sbr.rel (0) target = $region21
  $region20: #{linear_qnet_forward.1} parent=0 // pred_region
    _
  $region21: #{linear_qnet_forward.1} parent=0 // pred_fallthru
    _
  %v21 = vld [vmem:[%s0] sm:$0xff]
  %v22 = vld [vmem:[%s0 + $0x8] sm:$0xff]
  %v23 = vpack.c.bf16 %v22, %v21
  %v24 = vld [vmem:[%s1] sm:$0xf]
  %v25 = vld [vmem:[%s1 + $0x4] sm:$0xf]
  %v26 = vld [vmem:[%s2] sm:$0x1]
  %v28 = vperm.slane %v26, 0
  %v32 = vunpack.c.l.b16 %v24
  %v33 = vunpack.c.l.b16 %v25
  %v34 = vpack.c.b16 %v33, %v32
  %vm36 = vcmask 130048
  %v38 = vsel %vm36, %v23, 0
  %40 = vmatpush.bf16.msra.mxu0 0
  %41 = vmatpush.bf16.msra.mxu0 0
  %42 = vmatpush.bf16.msra.mxu0 0
  %43 = vmatpush.bf16.msra.mxu0 0
  %44 = vmatpush.bf16.msra.mxu0 0
  %45 = vmatpush.bf16.msra.mxu0 0
  %46 = vmatpush.bf16.msra.mxu0 0
  %47 = vmatpush.bf16.msra.mxu0 %v34
  %48 = vmatmul.bf16.gmra.mxu0 %v38
  %v49 = vpop.f32.mrf.mxu0
  %v50 = vadd.f32 %v28, %v49
  %v51 = vpop.f32.mrf.mxu0
  %v52 = vadd.f32 %v28, %v51
  %53 = vdwg.mxu0
  %v54 = vmax.f32 %v50, 0.0
  %v55 = vmax.f32 %v52, 0.0
  %v56 = vpack.c.bf16 %v55, %v54
  %v57 = vld [vmem:[%s3] sm:$0xf]
  %v58 = vld [vmem:[%s3 + $0x4] sm:$0xf]
  %v59 = vld [vmem:[%s3 + $0x8] sm:$0xf]
  %v60 = vld [vmem:[%s3 + $0xc] sm:$0xf]
  %v61 = vld [vmem:[%s3 + $0x10] sm:$0xf]
  %v62 = vld [vmem:[%s3 + $0x14] sm:$0xf]
  %v63 = vld [vmem:[%s3 + $0x18] sm:$0xf]
  %v64 = vld [vmem:[%s3 + $0x1c] sm:$0xf]
  %v65 = vld [vmem:[%s3 + $0x20] sm:$0xf]
  %v66 = vld [vmem:[%s3 + $0x24] sm:$0xf]
  %v67 = vld [vmem:[%s3 + $0x28] sm:$0xf]
  %v68 = vld [vmem:[%s3 + $0x2c] sm:$0xf]
  %v69 = vld [vmem:[%s3 + $0x30] sm:$0xf]
  %v70 = vld [vmem:[%s3 + $0x34] sm:$0xf]
  %v71 = vld [vmem:[%s3 + $0x38] sm:$0xf]
  %v72 = vld [vmem:[%s3 + $0x3c] sm:$0xf]
  %v73 = vld [vmem:[%s4] sm:$0x1]
  %v75 = vperm.slane %v73, 0
  %v93 = vunpack.c.l.b16 %v57
  %v94 = vunpack.c.l.b16 %v58
  %v95 = vunpack.c.l.b16 %v59
  %v96 = vunpack.c.l.b16 %v60
  %v97 = vunpack.c.l.b16 %v61
  %v98 = vunpack.c.l.b16 %v62
  %v99 = vunpack.c.l.b16 %v63
  %v100 = vunpack.c.l.b16 %v64
  %v101 = vunpack.c.l.b16 %v65
  %v102 = vunpack.c.l.b16 %v66
  %v103 = vunpack.c.l.b16 %v67
  %v104 = vunpack.c.l.b16 %v68
  %v105 = vunpack.c.l.b16 %v69
  %v106 = vunpack.c.l.b16 %v70
  %v107 = vunpack.c.l.b16 %v71
  %v108 = vunpack.c.l.b16 %v72
  %v109 = vpack.c.b16 %v94, %v93
  %v110 = vpack.c.b16 %v96, %v95
  %v111 = vpack.c.b16 %v98, %v97
  %v112 = vpack.c.b16 %v100, %v99
  %v113 = vpack.c.b16 %v102, %v101
  %v114 = vpack.c.b16 %v104, %v103
  %v115 = vpack.c.b16 %v106, %v105
  %v116 = vpack.c.b16 %v108, %v107
  %125 = vmatpush.bf16.msra.mxu0 %v116
  %126 = vmatpush.bf16.msra.mxu0 %v115
  %127 = vmatpush.bf16.msra.mxu0 %v114
  %128 = vmatpush.bf16.msra.mxu0 %v113
  %129 = vmatpush.bf16.msra.mxu0 %v112
  %130 = vmatpush.bf16.msra.mxu0 %v111
  %131 = vmatpush.bf16.msra.mxu0 %v110
  %132 = vmatpush.bf16.msra.mxu0 %v109
  %133 = vmatmul.bf16.gmra.mxu0 %v56
  %v134 = vpop.f32.mrf.mxu0
  %v135 = vadd.f32 %v75, %v134
  %v136 = vpop.f32.mrf.mxu0
  %v137 = vadd.f32 %v75, %v136
  %138 = vdwg.mxu0
  %vm139 = vcmask 31744
  %140 = vst.msk [vmem:[%s5] sm:$0xff] %vm139, %v135
  %141 = vst.msk [vmem:[%s5 + $0x8] sm:$0xff] %vm139, %v137
  // Predicated region
  $region22: #{linear_qnet_forward.1} parent=0 // pred_check
    _
  $region23: #{linear_qnet_forward.1} parent=0 // pred_check_branch
    %143 = sbr.rel (0) target = $region25
  $region24: #{linear_qnet_forward.1} parent=0 // pred_region
    _
  $region25: #{linear_qnet_forward.1} parent=0 // pred_fallthru
    _
  // Predicated region
  $region26: #{linear_qnet_forward.1} parent=0 // pred_check
    _
  $region27: #{linear_qnet_forward.1} parent=0 // pred_check_branch
    %145 = sbr.rel (0) target = $region29
  $region28: #{linear_qnet_forward.1} parent=0 // pred_region
    _
  $region29: #{linear_qnet_forward.1} parent=0 // pred_fallthru
    _

</llo_original>
